<compile_context>
chip_gen: v5e
topology: v5e:2x2
jax: 0.10.0
libtpu: 0.0.40
codegen_flags: <defaults>
</compile_context>

<pallas_src>
import functools

import jax
import jax.numpy as jnp
from jax import lax
from jax.experimental import pallas as pl
from jax.experimental.pallas import tpu as pltpu


# ----------------------------------------------------------------------------
# Kernels
# ----------------------------------------------------------------------------
def _make_fused_conv_bn_act_kernel(m_real, eps, slope, use_act):
    """Single-tile path: conv (one MXU matmul) + batch-stat BN + LeakyReLU."""
    inv_m = 1.0 / float(m_real)

    def kernel(w_ref, p_ref, scale_ref, shift_ref, o_ref):
        # w_ref:(Cout,K) bf16, p_ref:(K,Mp) bf16, scale/shift:(Cout,1) f32
        conv = jnp.dot(w_ref[...], p_ref[...],
                       preferred_element_type=jnp.float32)          # (Cout,Mp)
        # Padded lanes are zero -> contribute 0 to both sums; divide by real M.
        s1 = jnp.sum(conv, axis=1, keepdims=True)
        s2 = jnp.sum(conv * conv, axis=1, keepdims=True)
        mean = s1 * inv_m
        var = jnp.maximum(s2 * inv_m - mean * mean, 0.0)             # clamp
        y = (conv - mean) * (scale_ref[...] * lax.rsqrt(var + eps))
        y = y + shift_ref[...]
        if use_act:
            y = jnp.where(y > 0, y, slope * y)
        o_ref[...] = y.astype(o_ref.dtype)

    return kernel


def _conv_partials_kernel(w_ref, p_ref, conv_ref, s1_ref, s2_ref):
    """Gridded phase 1: conv tile + per-tile partial BN sums (independent per
    grid step -> 'parallel' semantics, both v7x TensorCores usable)."""
    conv = jnp.dot(w_ref[...], p_ref[...],
                   preferred_element_type=jnp.float32)               # (Cout,tm)
    conv_ref[...] = conv
    s1_ref[0] = jnp.sum(conv, axis=1, keepdims=True)                 # (Cout,1)
    s2_ref[0] = jnp.sum(conv * conv, axis=1, keepdims=True)          # (Cout,1)


def _make_affine_act_kernel(slope, use_act):
    """Gridded phase 2: y = conv * scale_hat + shift_hat, then LeakyReLU."""

    def kernel(conv_ref, scale_ref, shift_ref, o_ref):
        y = conv_ref[...] * scale_ref[...] + shift_ref[...]
        if use_act:
            y = jnp.where(y > 0, y, slope * y)
        o_ref[...] = y.astype(o_ref.dtype)

    return kernel


def _make_conv_bias_act_kernel(slope, use_act):
    """No-BN path: conv + bias + LeakyReLU, fully fused and gridded."""

    def kernel(w_ref, p_ref, shift_ref, o_ref):
        y = jnp.dot(w_ref[...], p_ref[...],
                    preferred_element_type=jnp.float32) + shift_ref[...]
        if use_act:
            y = jnp.where(y > 0, y, slope * y)
        o_ref[...] = y.astype(o_ref.dtype)

    return kernel


# ----------------------------------------------------------------------------
# Wrapper helpers
# ----------------------------------------------------------------------------
def _im2col_channel_major(x, KH, KW, stride, padding, mxu_dtype):
    """Layout plumbing, done once per layer in XLA, emitted directly in bf16 so
    no f32 patches tensor round-trips HBM."""
    N, Cin, H, W = x.shape
    Ho = (H + 2 * padding - KH) // stride + 1
    Wo = (W + 2 * padding - KW) // stride + 1
    K = Cin * KH * KW
    xp = jnp.pad(x.astype(mxu_dtype),
                 ((0, 0), (0, 0), (padding, padding), (padding, padding)))
    cols = [xp[:, :,
               kh:kh + stride * (Ho - 1) + 1:stride,
               kw:kw + stride * (Wo - 1) + 1:stride]
            for kh in range(KH) for kw in range(KW)]     # each (N,Cin,Ho,Wo)
    patches = jnp.stack(cols, axis=2)                    # (N,Cin,KH*KW,Ho,Wo)
    patches = patches.reshape(N, K, Ho * Wo)             # k = c*KH*KW+kh*KW+kw
    patches_t = patches.transpose(1, 0, 2).reshape(K, N * Ho * Wo)
    return patches_t, Ho, Wo, K


def _pick_tile_m(mp0, K, Cout, budget_bytes=12 * 1024 * 1024):
    """Largest 128-multiple lane tile whose double-buffered P+out tiles plus the
    resident weight fit a ~12 MiB budget (inside v5e's 16 MiB scoped default;
    >=512 lanes already reaches ~85% of HBM roofline, so no need to go huge on
    v6e/v7x).  Capped at 2048 lanes (diminishing returns)."""
    fixed = Cout * K * 2
    per_lane = 2 * (K * 2 + Cout * 4)                    # 2x: double buffering
    tm = (budget_bytes - fixed) // max(per_lane, 1)
    tm = max(128, min(2048, (tm // 128) * 128))
    return min(tm, mp0)


def _mosaic_params(vmem_bytes_estimate, semantics):
    # Explicit scoped-VMEM limit with ~2x headroom (v5e default 16 MiB, v7x
    # physical 64 MiB).  Tiles are sized for <=~13 MiB so this never exceeds
    # what the smallest generation provides.
    limit = int(min(max(2 * vmem_bytes_estimate + (2 << 20), 16 << 20), 48 << 20))
    return pltpu.CompilerParams(dimension_semantics=semantics,
                                vmem_limit_bytes=limit)


# ----------------------------------------------------------------------------
# CNNBlock forward
# ----------------------------------------------------------------------------
def cnn_block_forward(x, weight, scale, shift, *, stride=2, padding=1,
                      use_bn=True, use_activation=True, eps=1e-5,
                      negative_slope=0.2, mxu_dtype=jnp.bfloat16,
                      out_dtype=jnp.float32, tile_m=None,
                      channels_major_out=False):
    """CNNBlock forward. x: (N,Cin,H,W), weight: (Cout,Cin,KH,KW).
    scale = BN gamma, shift = BN beta (or conv bias when use_bn=False)."""
    N, Cin, H, W = x.shape
    Cout, Cin_w, KH, KW = weight.shape
    assert Cin_w == Cin

    patches_t, Ho, Wo, K = _im2col_channel_major(x, KH, KW, stride, padding,
                                                 mxu_dtype)
    M = N * Ho * Wo
    mp0 = -(-M // 128) * 128                              # multiple of 128

    tm = tile_m if tile_m is not None else _pick_tile_m(mp0, K, Cout)
    tm = max(128, (int(tm) // 128) * 128)
    tm = min(tm, mp0)
    Mp = -(-M // tm) * tm                                 # multiple of tm
    num_tiles = Mp // tm

    if Mp != M:
        patches_t = jnp.pad(patches_t, ((0, 0), (0, Mp - M)))
    w2 = weight.reshape(Cout, K).astype(mxu_dtype)
    scale2 = scale.reshape(Cout, 1).astype(jnp.float32)
    shift2 = shift.reshape(Cout, 1).astype(jnp.float32)

    conv_flops = 2 * Cout * K * Mp
    w_bytes = Cout * K * 2
    p_bytes = K * Mp * 2
    o_bytes = Cout * Mp * 4

    if use_bn and num_tiles == 1:
        # ---- tiny-shape path: everything in one fused grid step ----
        kern = _make_fused_conv_bn_act_kernel(M, eps, negative_slope,
                                              use_activation)
        vmem_est = w_bytes + 2 * p_bytes + 2 * o_bytes + 8 * Cout * 4
        out_t = pl.pallas_call(
            kern,
            out_shape=jax.ShapeDtypeStruct((Cout, Mp), out_dtype),
            grid=(1,),
            in_specs=[
                pl.BlockSpec((Cout, K), lambda i: (0, 0)),
                pl.BlockSpec((K, Mp), lambda i: (0, 0)),
                pl.BlockSpec((Cout, 1), lambda i: (0, 0)),
                pl.BlockSpec((Cout, 1), lambda i: (0, 0)),
            ],
            out_specs=pl.BlockSpec((Cout, Mp), lambda i: (0, 0)),
            compiler_params=_mosaic_params(vmem_est, ("arbitrary",)),
            cost_estimate=pl.CostEstimate(
                flops=conv_flops + 8 * Cout * Mp, transcendentals=0,
                bytes_accessed=w_bytes + p_bytes + o_bytes),
        )(w2, patches_t, scale2, shift2)

    elif use_bn:
        # ---- gridded path: conv + per-tile partial BN sums ("parallel") ----
        vmem_est1 = w_bytes + 2 * (K * tm * 2) + 2 * (Cout * tm * 4) + 8 * Cout * 4
        conv_t, s1_t, s2_t = pl.pallas_call(
            _conv_partials_kernel,
            out_shape=(jax.ShapeDtypeStruct((Cout, Mp), jnp.float32),
                       jax.ShapeDtypeStruct((num_tiles, Cout, 1), jnp.float32),
                       jax.ShapeDtypeStruct((num_tiles, Cout, 1), jnp.float32)),
            grid=(num_tiles,),
            in_specs=[
                pl.BlockSpec((Cout, K), lambda i: (0, 0)),   # resident weight
                pl.BlockSpec((K, tm), lambda i: (0, i)),     # pipelined P tile
            ],
            out_specs=(
                pl.BlockSpec((Cout, tm), lambda i: (0, i)),
                pl.BlockSpec((1, Cout, 1), lambda i: (i, 0, 0)),
                pl.BlockSpec((1, Cout, 1), lambda i: (i, 0, 0)),
            ),
            compiler_params=_mosaic_params(vmem_est1, ("parallel",)),
            cost_estimate=pl.CostEstimate(
                flops=conv_flops + 3 * Cout * Mp, transcendentals=0,
                bytes_accessed=w_bytes + p_bytes + o_bytes + 2 * num_tiles * Cout * 4),
        )(w2, patches_t)

        # Tiny finalize in XLA: fold batch stats + gamma/beta into an affine.
        gamma_f = scale.reshape(-1).astype(jnp.float32)
        beta_f = shift.reshape(-1).astype(jnp.float32)
        s1 = jnp.sum(s1_t[:, :, 0], axis=0)
        s2 = jnp.sum(s2_t[:, :, 0], axis=0)
        mean = s1 / M                                      # padded lanes are 0
        var = jnp.maximum(s2 / M - mean * mean, 0.0)       # clamp (review)
        inv_std = lax.rsqrt(var + eps)
        scale_hat = (gamma_f * inv_std).reshape(Cout, 1)
        shift_hat = (beta_f - mean * gamma_f * inv_std).reshape(Cout, 1)

        # ---- gridded phase 2: normalize + LeakyReLU ----
        # TODO(synk): when Cout*Mp*4B fits ~1/4 VMEM, keep conv tiles in a VMEM
        # scratch and normalize in a second grid phase to skip this HBM re-read.
        vmem_est2 = 4 * (Cout * tm * 4) + 8 * Cout * 4
        out_t = pl.pallas_call(
            _make_affine_act_kernel(negative_slope, use_activation),
            out_shape=jax.ShapeDtypeStruct((Cout, Mp), out_dtype),
            grid=(num_tiles,),
            in_specs=[
                pl.BlockSpec((Cout, tm), lambda i: (0, i)),
                pl.BlockSpec((Cout, 1), lambda i: (0, 0)),
                pl.BlockSpec((Cout, 1), lambda i: (0, 0)),
            ],
            out_specs=pl.BlockSpec((Cout, tm), lambda i: (0, i)),
            compiler_params=_mosaic_params(vmem_est2, ("parallel",)),
            cost_estimate=pl.CostEstimate(
                flops=3 * Cout * Mp, transcendentals=0,
                bytes_accessed=2 * Cout * Mp * 4),
        )(conv_t, scale_hat, shift_hat)

    else:
        # ---- no BN: conv + bias + LeakyReLU fully fused, gridded ----
        vmem_est = w_bytes + 2 * (K * tm * 2) + 2 * (Cout * tm * 4) + 4 * Cout * 4
        out_t = pl.pallas_call(
            _make_conv_bias_act_kernel(negative_slope, use_activation),
            out_shape=jax.ShapeDtypeStruct((Cout, Mp), out_dtype),
            grid=(num_tiles,),
            in_specs=[
                pl.BlockSpec((Cout, K), lambda i: (0, 0)),
                pl.BlockSpec((K, tm), lambda i: (0, i)),
                pl.BlockSpec((Cout, 1), lambda i: (0, 0)),
            ],
            out_specs=pl.BlockSpec((Cout, tm), lambda i: (0, i)),
            compiler_params=_mosaic_params(vmem_est, ("parallel",)),
            cost_estimate=pl.CostEstimate(
                flops=conv_flops + 2 * Cout * Mp, transcendentals=0,
                bytes_accessed=w_bytes + p_bytes + o_bytes),
        )(w2, patches_t, shift2)

    # (Cout, N*Ho*Wo) is already NCHW-flattened channel-major.
    out_cm = out_t[:, :M].reshape(Cout, N, Ho, Wo)
    if channels_major_out:
        return out_cm                                      # for stacked blocks
    return jnp.transpose(out_cm, (1, 0, 2, 3))             # (N, Cout, Ho, Wo)


# ----------------------------------------------------------------------------
# Pure-JAX reference (for correctness check)
# ----------------------------------------------------------------------------
def reference_forward(x, weight, gamma, beta, *, stride=2, padding=1,
                      use_bn=True, use_activation=True, eps=1e-5,
                      negative_slope=0.2):
    y = jax.lax.conv_general_dilated(
        x, weight, window_strides=(stride, stride),
        padding=((padding, padding), (padding, padding)),
        dimension_numbers=("NCHW", "OIHW", "NCHW"))
    if use_bn:
        m = jnp.mean(y, axis=(0, 2, 3), keepdims=True)
        v = jnp.var(y, axis=(0, 2, 3), keepdims=True)
        y = (y - m) / jnp.sqrt(v + eps) * gamma.reshape(1, -1, 1, 1) \
            + beta.reshape(1, -1, 1, 1)
    else:
        y = y + beta.reshape(1, -1, 1, 1)
    if use_activation:
        y = jnp.where(y > 0, y, negative_slope * y)
    return y


# ----------------------------------------------------------------------------
if __name__ == "__main__":
    key = jax.random.PRNGKey(0)
    k_x, k_w, k_g, k_b, k_x2 = jax.random.split(key, 5)

    N, Cin, Cout, H, W = 2, 4, 8, 16, 16
    x = jax.random.normal(k_x, (N, Cin, H, W), jnp.float32)
    weight = 0.1 * jax.random.normal(k_w, (Cout, Cin, 4, 4), jnp.float32)
    gamma = 1.0 + 0.1 * jax.random.normal(k_g, (Cout,), jnp.float32)
    beta = 0.1 * jax.random.normal(k_b, (Cout,), jnp.float32)

    # 1) Default small shape -> single-tile fused conv+BN+LeakyReLU kernel.
    fwd = jax.jit(functools.partial(cnn_block_forward,
                                    use_bn=True, use_activation=True))
    out = jax.block_until_ready(fwd(x, weight, gamma, beta))
    ref = reference_forward(x, weight, gamma, beta)
    assert out.shape == (N, Cout, H // 2, W // 2), out.shape
    err = float(jnp.max(jnp.abs(out - ref)))
    assert err < 5e-2, err                # bf16 MXU operands vs f32 reference

    # 2) Larger spatial + forced 128-lane tiles -> exercises the gridded
    #    conv + partial-BN-stats ("parallel") + finalize + affine/act path.
    x2 = jax.random.normal(k_x2, (N, Cin, 32, 32), jnp.float32)
    fwd2 = jax.jit(functools.partial(cnn_block_forward, use_bn=True,
                                     use_activation=True, tile_m=128))
    out2 = jax.block_until_ready(fwd2(x2, weight, gamma, beta))
    ref2 = reference_forward(x2, weight, gamma, beta)
    assert out2.shape == (N, Cout, 16, 16), out2.shape
    err2 = float(jnp.max(jnp.abs(out2 - ref2)))
    assert err2 < 5e-2, err2

    # 3) use_bn=False (conv bias) + LeakyReLU single-kernel gridded path.
    fwd3 = jax.jit(functools.partial(cnn_block_forward, use_bn=False,
                                     use_activation=True))
    out3 = jax.block_until_ready(fwd3(x, weight, gamma, beta))
    ref3 = reference_forward(x, weight, gamma, beta, use_bn=False)
    err3 = float(jnp.max(jnp.abs(out3 - ref3)))
    assert err3 < 5e-2, err3

    print("KERNEL_OK")
</pallas_src>

<mosaic_0001>
module attributes {stable_mosaic.version = 11 : i64} {
  func.func @kernel(%arg0: i32, %arg1: memref<8x64xbf16, #tpu.memory_space<vmem>>, %arg2: memref<64x128xbf16, #tpu.memory_space<vmem>>, %arg3: memref<8x1xf32, #tpu.memory_space<vmem>>, %arg4: memref<8x1xf32, #tpu.memory_space<vmem>>, %arg5: memref<8x128xf32, #tpu.memory_space<vmem>>) attributes {dimension_semantics = [#tpu.dimension_semantics<arbitrary>], iteration_bounds = array<i64: 1>, scalar_prefetch = 0 : i64, scratch_operands = 0 : i64, tpu.core_type = #tpu.core_type<tc>, window_params = [{pipeline_mode = #tpu.pipeline_mode<synchronous>, transform_indices = @transform_0, window_bounds = array<i64: 8, 64>}, {pipeline_mode = #tpu.pipeline_mode<synchronous>, transform_indices = @transform_1, window_bounds = array<i64: 64, 128>}, {pipeline_mode = #tpu.pipeline_mode<synchronous>, transform_indices = @transform_2, window_bounds = array<i64: 8, 1>}, {pipeline_mode = #tpu.pipeline_mode<synchronous>, transform_indices = @transform_3, window_bounds = array<i64: 8, 1>}, {pipeline_mode = #tpu.pipeline_mode<synchronous>, transform_indices = @transform_4, window_bounds = array<i64: 8, 128>}]} {
    %c0 = arith.constant 0 : index
    %c0_0 = arith.constant 0 : index
    %0 = vector.load %arg1[%c0, %c0_0] : memref<8x64xbf16, #tpu.memory_space<vmem>>, vector<8x64xbf16>
    %c0_1 = arith.constant 0 : index
    %c0_2 = arith.constant 0 : index
    %1 = vector.load %arg2[%c0_1, %c0_2] : memref<64x128xbf16, #tpu.memory_space<vmem>>, vector<64x128xbf16>
    %cst = arith.constant dense<0.000000e+00> : vector<8x128xf32>
    %2 = tpu.matmul %0, %1, %cst {dimension_numbers = #tpu.dot_dimension_numbers<[1], [0], [0], [1], [0, 0, 1, 1], [], []>} : vector<8x64xbf16>, vector<64x128xbf16>, vector<8x128xf32> -> vector<8x128xf32>
    %cst_3 = arith.constant dense<0.000000e+00> : vector<8xf32>
    %3 = vector.multi_reduction <add>, %2, %cst_3 [1] : vector<8x128xf32> to vector<8xf32>
    %4 = vector.shape_cast %3 : vector<8xf32> to vector<8x1xf32>
    %5 = arith.mulf %2, %2 : vector<8x128xf32>
    %cst_4 = arith.constant dense<0.000000e+00> : vector<8xf32>
    %6 = vector.multi_reduction <add>, %5, %cst_4 [1] : vector<8x128xf32> to vector<8xf32>
    %7 = vector.shape_cast %6 : vector<8xf32> to vector<8x1xf32>
    %cst_5 = arith.constant 7.812500e-03 : f32
    %8 = vector.broadcast %cst_5 : f32 to vector<8x1xf32>
    %9 = arith.mulf %4, %8 : vector<8x1xf32>
    %cst_6 = arith.constant 7.812500e-03 : f32
    %10 = vector.broadcast %cst_6 : f32 to vector<8x1xf32>
    %11 = arith.mulf %7, %10 : vector<8x1xf32>
    %12 = arith.mulf %9, %9 : vector<8x1xf32>
    %13 = arith.subf %11, %12 : vector<8x1xf32>
    %cst_7 = arith.constant 0.000000e+00 : f32
    %14 = vector.broadcast %cst_7 : f32 to vector<8x1xf32>
    %15 = arith.maximumf %13, %14 : vector<8x1xf32>
    %16 = vector.broadcast %9 : vector<8x1xf32> to vector<8x128xf32>
    %17 = arith.subf %2, %16 : vector<8x128xf32>
    %c0_8 = arith.constant 0 : index
    %c0_9 = arith.constant 0 : index
    %18 = vector.load %arg3[%c0_8, %c0_9] : memref<8x1xf32, #tpu.memory_space<vmem>>, vector<8x1xf32>
    %cst_10 = arith.constant 9.99999974E-6 : f32
    %19 = vector.broadcast %cst_10 : f32 to vector<8x1xf32>
    %20 = arith.addf %15, %19 : vector<8x1xf32>
    %21 = math.rsqrt %20 : vector<8x1xf32>
    %22 = arith.mulf %18, %21 : vector<8x1xf32>
    %23 = vector.broadcast %22 : vector<8x1xf32> to vector<8x128xf32>
    %24 = arith.mulf %17, %23 : vector<8x128xf32>
    %c0_11 = arith.constant 0 : index
    %c0_12 = arith.constant 0 : index
    %25 = vector.load %arg4[%c0_11, %c0_12] : memref<8x1xf32, #tpu.memory_space<vmem>>, vector<8x1xf32>
    %26 = vector.broadcast %25 : vector<8x1xf32> to vector<8x128xf32>
    %27 = arith.addf %24, %26 : vector<8x128xf32>
    %cst_13 = arith.constant 0.000000e+00 : f32
    %28 = vector.broadcast %cst_13 : f32 to vector<8x128xf32>
    %29 = arith.cmpf ogt, %27, %28 : vector<8x128xf32>
    %cst_14 = arith.constant 2.000000e-01 : f32
    %30 = vector.broadcast %cst_14 : f32 to vector<8x128xf32>
    %31 = arith.mulf %30, %27 : vector<8x128xf32>
    %32 = arith.select %29, %27, %31 : vector<8x128xi1>, vector<8x128xf32>
    %c0_15 = arith.constant 0 : index
    %c0_16 = arith.constant 0 : index
    %33 = vector.load %arg5[%c0_15, %c0_16] : memref<8x128xf32, #tpu.memory_space<vmem>>, vector<8x128xf32>
    tpu.vector_store %arg5[%c0_15, %c0_16], %32 {strides = array<i32>} : memref<8x128xf32, #tpu.memory_space<vmem>>, vector<8x128xf32>,
    return
  }
  func.func @transform_0(%arg0: i32) -> (i32, i32) {
    %c0_i32 = arith.constant 0 : i32
    %c0_i32_0 = arith.constant 0 : i32
    %c0_i32_1 = arith.constant 0 : i32
    return %c0_i32, %c0_i32_0 : i32, i32
  }
  func.func @transform_1(%arg0: i32) -> (i32, i32) {
    %c0_i32 = arith.constant 0 : i32
    %c0_i32_0 = arith.constant 0 : i32
    %c0_i32_1 = arith.constant 0 : i32
    return %c0_i32, %c0_i32_0 : i32, i32
  }
  func.func @transform_2(%arg0: i32) -> (i32, i32) {
    %c0_i32 = arith.constant 0 : i32
    %c0_i32_0 = arith.constant 0 : i32
    %c0_i32_1 = arith.constant 0 : i32
    return %c0_i32, %c0_i32_0 : i32, i32
  }
  func.func @transform_3(%arg0: i32) -> (i32, i32) {
    %c0_i32 = arith.constant 0 : i32
    %c0_i32_0 = arith.constant 0 : i32
    %c0_i32_1 = arith.constant 0 : i32
    return %c0_i32, %c0_i32_0 : i32, i32
  }
  func.func @transform_4(%arg0: i32) -> (i32, i32) {
    %c0_i32 = arith.constant 0 : i32
    %c0_i32_0 = arith.constant 0 : i32
    %c0_i32_1 = arith.constant 0 : i32
    return %c0_i32, %c0_i32_0 : i32, i32
  }
}

</mosaic_0001>

<llo_original>
// kernel: cnn_block_forward.1
$region0: #{cnn_block_forward.1}
  #allocation0 [shape = 'u32[]', space=smem, size = 0x4, offset = 0x4, fixed_abs, tag = 'smem constant byte address 0x4 - core index']
  #allocation1 [shape = 'u32[72,128]{1,0:T(1,128)}', space=vmem, size = 0x9000, scoped, tag = 'internal scratch']
  %s0 = inlined_call_operand.vmem [shape: bf16[8,64], index: 0, kind: input, shape index: {}]
  %s1 = inlined_call_operand.vmem [shape: bf16[64,128], index: 1, kind: input, shape index: {}]
  %s2 = inlined_call_operand.vmem [shape: f32[8,1], index: 2, kind: input, shape index: {}]
  %s3 = inlined_call_operand.vmem [shape: f32[8,1], index: 3, kind: input, shape index: {}]
  %s4 = inlined_call_operand.vmem [shape: f32[8,128], index: 4, kind: output, shape index: {}]
  %s5 = sld [smem:[#allocation0]]
  $region26: #{cnn_block_forward.1} parent=0
    _
  %s7 = ssub.s32 1, %s5
  %s8 = scalar_select 0, %s7, %s5
  // Predicated region
  $region2: #{cnn_block_forward.1} parent=0 // pred_check
    _
  $region3: #{cnn_block_forward.1} parent=0 // pred_check_branch
    %10 = sbr.rel (0) target = $region5
  $region4: #{cnn_block_forward.1} parent=0 // pred_region
    _
  $region5: #{cnn_block_forward.1} parent=0 // pred_fallthru
    _
  // Predicated region
  $region6: #{cnn_block_forward.1} parent=0 // pred_check
    _
  $region7: #{cnn_block_forward.1} parent=0 // pred_check_branch
    %12 = sbr.rel (0) target = $region9
  $region8: #{cnn_block_forward.1} parent=0 // pred_region
    _
  $region9: #{cnn_block_forward.1} parent=0 // pred_fallthru
    _
  // Predicated region
  $region10: #{cnn_block_forward.1} parent=0 // pred_check
    _
  $region11: #{cnn_block_forward.1} parent=0 // pred_check_branch
    %14 = sbr.rel (0) target = $region13
  $region12: #{cnn_block_forward.1} parent=0 // pred_region
    _
  $region13: #{cnn_block_forward.1} parent=0 // pred_fallthru
    _
  // Predicated region
  $region14: #{cnn_block_forward.1} parent=0 // pred_check
    _
  $region15: #{cnn_block_forward.1} parent=0 // pred_check_branch
    %16 = sbr.rel (0) target = $region17
  $region16: #{cnn_block_forward.1} parent=0 // pred_region
    _
  $region17: #{cnn_block_forward.1} parent=0 // pred_fallthru
    _
  %v18 = vld [vmem:[%s0] sm:$0xf]
  %v19 = vld [vmem:[%s1] sm:$0xf]
  %v20 = vld [vmem:[%s1 + $0x4] sm:$0xf]
  %v21 = vld [vmem:[%s1 + $0x8] sm:$0xf]
  %v22 = vld [vmem:[%s1 + $0xc] sm:$0xf]
  %v23 = vld [vmem:[%s1 + $0x10] sm:$0xf]
  %v24 = vld [vmem:[%s1 + $0x14] sm:$0xf]
  %v25 = vld [vmem:[%s1 + $0x18] sm:$0xf]
  %v26 = vld [vmem:[%s1 + $0x1c] sm:$0xf]
  %v35 = vunpack.c.l.b16 %v19
  %v36 = vunpack.c.l.b16 %v20
  %v37 = vunpack.c.l.b16 %v21
  %v38 = vunpack.c.l.b16 %v22
  %v39 = vunpack.c.l.b16 %v23
  %v40 = vunpack.c.l.b16 %v24
  %v41 = vunpack.c.l.b16 %v25
  %v42 = vunpack.c.l.b16 %v26
  %v43 = vpack.c.b16 %v36, %v35
  %v44 = vpack.c.b16 %v38, %v37
  %v45 = vpack.c.b16 %v40, %v39
  %v46 = vpack.c.b16 %v42, %v41
  %vm51 = vcmask 523264
  %v53 = vsel %vm51, %v18, 0
  %55 = vmatpush.bf16.msra.mxu0 0
  %56 = vmatpush.bf16.msra.mxu0 0
  %57 = vmatpush.bf16.msra.mxu0 0
  %58 = vmatpush.bf16.msra.mxu0 0
  %59 = vmatpush.bf16.msra.mxu0 %v46
  %60 = vmatpush.bf16.msra.mxu0 %v45
  %61 = vmatpush.bf16.msra.mxu0 %v44
  %62 = vmatpush.bf16.msra.mxu0 %v43
  %63 = vmatmul.bf16.gmra.mxu0 %v53
  %v64 = vpop.f32.mrf.mxu0
  %v65 = vadd.f32 0.0, %v64
  %v66 = vpop.f32.mrf.mxu0
  %67 = vdwg.mxu0
  %68 = vadd.xlane.f32.xlu0 %v65
  %v69 = vpop.xlane.xlu0 %68
  %v70 = vmul.f32 %v65, %v65
  %71 = vadd.xlane.f32.xlu0 %v70
  %v72 = vpop.xlane.xlu0 %71
  %v73 = vmul.f32 %v69, 0.0078125
  %v74 = vmul.f32 %v72, 0.0078125
  %v75 = vmul.f32 %v73, %v73
  %v76 = vsub.f32 %v74, %v75
  %v77 = vmax.f32 %v76, 0.0
  %v78 = vsub.f32 %v65, %v73
  %v79 = vld [vmem:[%s2] sm:$0xff]
  %v80 = vadd.f32 %v77, 1e-05
  %v81 = vrsqrt.pop %v80
  %v82 = vmul.f32 %v81, %v80
  %v83 = vmul.f32 %v82, %v81
  %v84 = vmul.f32 0.5, %v83
  %v85 = vsub.f32 1.5, %v84
  %v86 = vmul.f32 %v81, %v85
  %vm87 = vweird.f32 %v80
  %vm88 = vweird.f32 %v81
  %vm89 = vmor %vm87, %vm88
  %v90 = vsel %vm89, %v81, %v86
  %v91 = vmul.f32 %v79, %v90
  %93 = vset.pattern.permute.xlu0 0
  %94 = vperm.xlu0 %93, %v91
  %v95 = vpop.permute.xlu0 %94
  %v97 = vmul.f32 %v78, %v95
  %v98 = vld [vmem:[%s3] sm:$0xff]
  %100 = vset.pattern.permute.xlu0 0
  %101 = vperm.xlu0 %100, %v98
  %v102 = vpop.permute.xlu0 %101
  %v104 = vadd.f32 %v97, %v102
  %vm105 = vcmp.gt.f32.partialorder %v104, 0.0
  %v106 = vmul.f32 %v104, 0.2
  %v107 = vsel %vm105, %v104, %v106
  %108 = vst [vmem:[%s4] sm:$0xff] %v107
  // Predicated region
  $region18: #{cnn_block_forward.1} parent=0 // pred_check
    _
  $region19: #{cnn_block_forward.1} parent=0 // pred_check_branch
    %110 = sbr.rel (0) target = $region21
  $region20: #{cnn_block_forward.1} parent=0 // pred_region
    _
  $region21: #{cnn_block_forward.1} parent=0 // pred_fallthru
    _
  // Predicated region
  $region22: #{cnn_block_forward.1} parent=0 // pred_check
    _
  $region23: #{cnn_block_forward.1} parent=0 // pred_check_branch
    %112 = sbr.rel (0) target = $region25
  $region24: #{cnn_block_forward.1} parent=0 // pred_region
    _
  $region25: #{cnn_block_forward.1} parent=0 // pred_fallthru
    _

</llo_original>
